<compile_context>
chip_gen: v6e
topology: v6e:2x2x1
jax: 0.10.0
libtpu: 0.0.40
codegen_flags: <defaults>
</compile_context>

<pallas_src>
import functools

import jax
import jax.numpy as jnp
from jax import lax
from jax.experimental import pallas as pl
from jax.experimental.pallas import tpu as pltpu


def _head_kernel(emph_ref, h_ref, wd_ref, bd_ref, wo_ref, bo_ref, out_ref,
                 acc_ref, *, dephos, inv_s, mid_tile, mid_off, needs_mask,
                 seq_len):
    """One (batch_tile, seq_tile) grid step.

    emph_ref : SMEM (1, 1)         emphasis_factor (scalar)
    h_ref    : VMEM (bb, ts, H)    hidden_states tile (native dtype)
    wd_ref   : VMEM (H, H)         dense.weight, original (out, in) layout
    bd_ref   : VMEM (1, H)         dense.bias
    wo_ref   : VMEM (Lp, H)        out_proj.weight, zero-padded to lane-dense Lp
    bo_ref   : VMEM (1, Lp)        out_proj.bias, zero-padded
    out_ref  : VMEM (bb, Lp)       lane-dense logits slab (leading dim squeezed)
    acc_ref  : VMEM (bb, 1, H) f32 running (emphasized) sum over the sequence
    """
    k = pl.program_id(1)
    ns = pl.num_programs(1)

    @pl.when(k == 0)
    def _init():
        acc_ref[...] = jnp.zeros_like(acc_ref)

    h = h_ref[...]                               # (bb, ts, H), native dtype
    bb, ts, _ = h.shape
    ones = jnp.ones((bb, 1, ts), dtype=h.dtype)  # tiny; hoisted by compiler

    def accumulate(tile):
        # Sequence reduction on the MXU: (bb,1,ts) @ (bb,ts,H) -> (bb,1,H),
        # f32 accumulation, no explicit per-element cast on the VPU.
        acc_ref[...] += jnp.einsum('bqt,bth->bqh', ones, tile,
                                   preferred_element_type=jnp.float32)

    if needs_mask:
        @pl.when(k < ns - 1)
        def _full_tile():
            accumulate(h)

        @pl.when(k == ns - 1)
        def _trailing_tile():
            # Mask only the single partial tile (padded rows may hold garbage;
            # a select keeps them out of the MXU accumulator).
            row = lax.broadcasted_iota(jnp.int32, (1, ts, 1), 1)
            valid = (k * ts + row) < seq_len
            accumulate(jnp.where(valid, h, jnp.zeros_like(h)))
    else:
        accumulate(h)

    if dephos:
        @pl.when(k == mid_tile)
        def _mid_token():
            # Fold emphasis_factor * middle_embedding into the accumulator,
            # pre-scaled by S so the single (1/S) in finalize yields
            # mean + emphasis * middle.  (middle_idx < S, always in-bounds.)
            mid = h[:, mid_off:mid_off + 1, :].astype(jnp.float32)  # (bb,1,H)
            acc_ref[...] += (emph_ref[0, 0] * float(seq_len)) * mid

    @pl.when(k == ns - 1)
    def _finalize():
        x = acc_ref[...][:, 0, :] * inv_s        # (bb, H) f32

        # dense (x @ W_d^T + b_d) -> tanh ; weights stay in native dtype and
        # original (out, in) layout (bf16 weights hit the MXU natively).
        wd = wd_ref[...]
        y = lax.dot_general(x.astype(wd.dtype), wd, (((1,), (1,)), ((), ())),
                            preferred_element_type=jnp.float32)
        y = jnp.tanh(y + bd_ref[...].astype(jnp.float32))

        # out_proj (y @ W_o^T + b_o), lane-dense padded to Lp.
        wo = wo_ref[...]
        logits = lax.dot_general(y.astype(wo.dtype), wo,
                                 (((1,), (1,)), ((), ())),
                                 preferred_element_type=jnp.float32)
        logits = logits + bo_ref[...].astype(jnp.float32)
        out_ref[...] = logits.astype(out_ref.dtype)


def _pick_batch_block(B):
    """Largest divisor of B that leaves >= 2 batch tiles, so the 'parallel'
    grid axis can be split across both v7x TensorCores (nb >= 2 when B >= 2)."""
    if B <= 1:
        return 1
    for cand in range(B // 2, 0, -1):
        if B % cand == 0:
            return cand
    return 1


def _vmem_capacity_bytes():
    try:
        return int(pltpu.get_tpu_info().vmem_capacity_bytes)
    except Exception:
        return 64 << 20   # per-TC v7x capacity; conservative on v5e/v6e


def _pick_seq_tile(S, bb, H, itemsize, vmem_cap, resident_bytes):
    """Chip-aware hidden-tile sizing: fill VMEM left over after the resident
    (double-buffered) weights/output/scratch, capped at 16 MiB per buffer."""
    headroom = 8 << 20                    # compiler-internal scratch / misc
    avail = vmem_cap - resident_bytes - headroom
    per_buf = max(1 << 20, avail // 2)    # 2 = hidden-tile double buffer
    per_buf = min(per_buf, 16 << 20)      # diminishing returns past ~16 MiB
    ts = per_buf // max(1, bb * H * itemsize)
    if ts >= S:
        return S
    return max(8, (ts // 8) * 8)          # sublane (8) constraint


def t5_encoder_classification_head(hidden_states, params, problem="dephos",
                                   *, seq_tile=None):
    """hidden_states: (B, S, H), any float dtype. Returns f32 logits (B, L)."""
    B, S, H = hidden_states.shape
    L = params["out_proj_w"].shape[0]
    Lp = ((L + 127) // 128) * 128                 # lane-dense output width

    # Weights stay in their native dtype / (out, in) layout; only cheap
    # reshapes of 1-D biases and a tiny zero-pad of out_proj to Lp host-side.
    wd = params["dense_w"]                        # (H, H)
    bd = params["dense_b"].reshape((1, H))        # (1, H)
    wo = params["out_proj_w"]                     # (L, H)
    bo = params["out_proj_b"].reshape((1, L))     # (1, L)
    if Lp != L:
        wo = jnp.pad(wo, ((0, Lp - L), (0, 0)))
        bo = jnp.pad(bo, ((0, 0), (0, Lp - L)))
    emph = jnp.asarray(params["emphasis_factor"], jnp.float32).reshape((1, 1))

    in_itemsize = jnp.dtype(hidden_states.dtype).itemsize
    wd_itemsize = jnp.dtype(wd.dtype).itemsize
    wo_itemsize = jnp.dtype(wo.dtype).itemsize

    bb = _pick_batch_block(B)
    nb = B // bb

    # VMEM held besides the streaming hidden tile.  Pallas double-buffers
    # every pipelined input/output even with constant index maps, so count
    # the weights and the output slab twice; acc scratch is single.
    resident = (2 * ((H * H + H) * wd_itemsize + (Lp * H + Lp) * wo_itemsize)
                + 2 * bb * Lp * 4
                + bb * H * 4)

    vmem_cap = _vmem_capacity_bytes()
    if seq_tile is None:
        ts = _pick_seq_tile(S, bb, H, in_itemsize, vmem_cap, resident)
    else:
        # Validate caller-provided tiles against the sublane constraint.
        ts = S if int(seq_tile) >= S else max(8, (int(seq_tile) // 8) * 8)

    ns = pl.cdiv(S, ts)
    needs_mask = (S % ts) != 0

    middle_idx = S // 2
    mid_tile = middle_idx // ts
    mid_off = middle_idx % ts

    kernel = functools.partial(
        _head_kernel,
        dephos=(problem == "dephos"),
        inv_s=1.0 / S,
        mid_tile=mid_tile,
        mid_off=mid_off,
        needs_mask=needs_mask,
        seq_len=S,
    )

    # Explicit VMEM budget: double-buffered hidden tile + double-buffered
    # weights/output + scratch, plus headroom; never above physical capacity.
    est = 2 * bb * ts * H * in_itemsize + resident
    vmem_limit = int(min(vmem_cap, max(32 << 20, est + (8 << 20))))

    grid_spec = pltpu.PrefetchScalarGridSpec(
        num_scalar_prefetch=0,
        grid=(nb, ns),
        in_specs=[
            pl.BlockSpec(memory_space=pltpu.MemorySpace.SMEM),      # emphasis
            pl.BlockSpec((bb, ts, H), lambda b, k: (b, k, 0)),      # hidden tile
            pl.BlockSpec((H, H), lambda b, k: (0, 0)),              # dense_w
            pl.BlockSpec((1, H), lambda b, k: (0, 0)),              # dense_b
            pl.BlockSpec((Lp, H), lambda b, k: (0, 0)),             # out_proj_w
            pl.BlockSpec((1, Lp), lambda b, k: (0, 0)),             # out_proj_b
        ],
        # (nb, bb, Lp) output slab: the block's last two dims equal the full
        # array dims, so any bb (including 1) satisfies the (8,128) rule while
        # keeping the store lane-dense and unmasked.
        out_specs=pl.BlockSpec((None, bb, Lp), lambda b, k: (b, 0, 0)),
        scratch_shapes=[
            pltpu.VMEM((bb, 1, H), jnp.float32),   # running (emphasized) sum
        ],
    )

    out_padded = pl.pallas_call(
        kernel,
        out_shape=jax.ShapeDtypeStruct((nb, bb, Lp), jnp.float32),
        grid_spec=grid_spec,
        compiler_params=pltpu.CompilerParams(
            dimension_semantics=("parallel", "arbitrary"),
            vmem_limit_bytes=vmem_limit,
        ),
    )(emph, hidden_states, wd, bd, wo, bo)

    return out_padded.reshape(B, Lp)[:, :L]


def _reference(hidden_states, params, problem="dephos"):
    h = hidden_states.astype(jnp.float32)
    avg = jnp.mean(h, axis=1)
    if problem == "dephos":
        mid = h[:, h.shape[1] // 2, :]
        x = mid * jnp.asarray(params["emphasis_factor"], jnp.float32) + avg
    else:
        x = avg
    x = jnp.tanh(x @ params["dense_w"].astype(jnp.float32).T
                 + params["dense_b"].astype(jnp.float32))
    return (x @ params["out_proj_w"].astype(jnp.float32).T
            + params["out_proj_b"].astype(jnp.float32))


if __name__ == "__main__":
    # Small shapes consistent with the module: batch=2, hidden=32, labels=4.
    # seq=16 with seq_tile=8 exercises init / mid-token / finalize and the
    # 2-way "parallel" batch split (bb=1, nb=2); seq=20 additionally exercises
    # the masked trailing partial tile.
    B, H, L = 2, 32, 4

    key = jax.random.PRNGKey(0)
    k_h, k_h2, k_dw, k_db, k_ow, k_ob = jax.random.split(key, 6)

    # hidden_states kept in bf16 (native activation dtype) -- consumed by the
    # MXU directly inside the kernel, never upcast tile-wide on the VPU.
    hidden_states = jax.random.normal(k_h, (B, 16, H), dtype=jnp.float32)
    hidden_states = hidden_states.astype(jnp.bfloat16)

    params = {
        "dense_w": jax.random.normal(k_dw, (H, H), dtype=jnp.float32) * 0.05,
        "dense_b": jax.random.normal(k_db, (H,), dtype=jnp.float32) * 0.05,
        "out_proj_w": jax.random.normal(k_ow, (L, H), dtype=jnp.float32) * 0.05,
        "out_proj_b": jax.random.normal(k_ob, (L,), dtype=jnp.float32) * 0.05,
        "emphasis_factor": jnp.array(1.0, dtype=jnp.float32),  # module init
    }

    # dephos path (middle-token emphasis + mean).
    logits = t5_encoder_classification_head(hidden_states, params,
                                            problem="dephos", seq_tile=8)
    logits = jax.block_until_ready(logits)
    ref = _reference(hidden_states, params, problem="dephos")
    assert logits.shape == (B, L)
    assert jnp.allclose(logits, ref, atol=2e-4, rtol=2e-4), "dephos mismatch"

    # mean-only path.
    logits2 = t5_encoder_classification_head(hidden_states, params,
                                             problem="regression", seq_tile=8)
    logits2 = jax.block_until_ready(logits2)
    ref2 = _reference(hidden_states, params, problem="regression")
    assert jnp.allclose(logits2, ref2, atol=2e-4, rtol=2e-4), "mean mismatch"

    # ragged sequence (S % seq_tile != 0) -> masked trailing tile path.
    hidden_ragged = jax.random.normal(k_h2, (B, 20, H), dtype=jnp.float32)
    hidden_ragged = hidden_ragged.astype(jnp.bfloat16)
    logits3 = t5_encoder_classification_head(hidden_ragged, params,
                                             problem="dephos", seq_tile=8)
    logits3 = jax.block_until_ready(logits3)
    ref3 = _reference(hidden_ragged, params, problem="dephos")
    assert jnp.allclose(logits3, ref3, atol=2e-4, rtol=2e-4), "ragged mismatch"

    print("KERNEL_OK")
</pallas_src>

<mosaic_0001>
module attributes {stable_mosaic.version = 11 : i64} {
  func.func @_head_kernel(%arg0: i32, %arg1: i32, %arg2: memref<1x1xf32, #tpu.memory_space<smem>>, %arg3: memref<1x8x32xbf16, #tpu.memory_space<vmem>>, %arg4: memref<32x32xf32, #tpu.memory_space<vmem>>, %arg5: memref<1x32xf32, #tpu.memory_space<vmem>>, %arg6: memref<128x32xf32, #tpu.memory_space<vmem>>, %arg7: memref<1x128xf32, #tpu.memory_space<vmem>>, %arg8: memref<1x1x128xf32, #tpu.memory_space<vmem>>, %arg9: memref<1x1x32xf32, #tpu.memory_space<vmem>>) attributes {dimension_semantics = [#tpu.dimension_semantics<parallel>, #tpu.dimension_semantics<arbitrary>], iteration_bounds = array<i64: 2, 2>, scalar_prefetch = 0 : i64, scratch_operands = 1 : i64, tpu.core_type = #tpu.core_type<tc>, window_params = [{transform_indices = @transform_0, window_bounds = array<i64: 1, 1>}, {transform_indices = @transform_1, window_bounds = array<i64: 1, 8, 32>}, {pipeline_mode = #tpu.pipeline_mode<synchronous>, transform_indices = @transform_2, window_bounds = array<i64: 32, 32>}, {pipeline_mode = #tpu.pipeline_mode<synchronous>, transform_indices = @transform_3, window_bounds = array<i64: 1, 32>}, {pipeline_mode = #tpu.pipeline_mode<synchronous>, transform_indices = @transform_4, window_bounds = array<i64: 128, 32>}, {pipeline_mode = #tpu.pipeline_mode<synchronous>, transform_indices = @transform_5, window_bounds = array<i64: 1, 128>}, {transform_indices = @transform_6, window_bounds = array<i64: 1, 1, 128>}]} {
    %c0_i32 = arith.constant 0 : i32
    %0 = arith.cmpi eq, %arg1, %c0_i32 : i32
    %1 = arith.extui %0 : i1 to i32
    %c0_i32_0 = arith.constant 0 : i32
    %2 = arith.cmpi ne, %1, %c0_i32_0 : i32
    scf.if %2 {
      %cst_13 = arith.constant 0.000000e+00 : f32
      %15 = vector.broadcast %cst_13 : f32 to vector<1x1x32xf32>
      %c0_14 = arith.constant 0 : index
      %c0_15 = arith.constant 0 : index
      %c0_16 = arith.constant 0 : index
      %16 = vector.load %arg9[%c0_14, %c0_15, %c0_16] : memref<1x1x32xf32, #tpu.memory_space<vmem>>, vector<1x1x32xf32>
      tpu.vector_store %arg9[%c0_14, %c0_15, %c0_16], %15 {strides = array<i32>} : memref<1x1x32xf32, #tpu.memory_space<vmem>>, vector<1x1x32xf32>,
    } else {
    }
    %c0 = arith.constant 0 : index
    %c0_1 = arith.constant 0 : index
    %c0_2 = arith.constant 0 : index
    %3 = vector.load %arg3[%c0, %c0_1, %c0_2] : memref<1x8x32xbf16, #tpu.memory_space<vmem>>, vector<1x8x32xbf16>
    %cst = arith.constant 1.000000e+00 : bf16
    %4 = vector.broadcast %cst : bf16 to vector<1x1x8xbf16>
    %c0_3 = arith.constant 0 : index
    %c0_4 = arith.constant 0 : index
    %c0_5 = arith.constant 0 : index
    %5 = vector.load %arg9[%c0_3, %c0_4, %c0_5] : memref<1x1x32xf32, #tpu.memory_space<vmem>>, vector<1x1x32xf32>
    "tpu.trace_start"() <{level = 10 : i32, message = "bqt,bth->bqh"}> : () -> ()
    %cst_6 = arith.constant dense<0.000000e+00> : vector<1x1x32xf32>
    %6 = tpu.matmul %4, %3, %cst_6 {dimension_numbers = #tpu.dot_dimension_numbers<[2], [1], [1], [2], [0, 0, 0, 1, 1, 2], [0], [0]>} : vector<1x1x8xbf16>, vector<1x8x32xbf16>, vector<1x1x32xf32> -> vector<1x1x32xf32>
    "tpu.trace_stop"() : () -> ()
    %7 = arith.addf %5, %6 : vector<1x1x32xf32>
    %c0_7 = arith.constant 0 : index
    %c0_8 = arith.constant 0 : index
    %c0_9 = arith.constant 0 : index
    %8 = vector.load %arg9[%c0_7, %c0_8, %c0_9] : memref<1x1x32xf32, #tpu.memory_space<vmem>>, vector<1x1x32xf32>
    tpu.vector_store %arg9[%c0_7, %c0_8, %c0_9], %7 {strides = array<i32>} : memref<1x1x32xf32, #tpu.memory_space<vmem>>, vector<1x1x32xf32>,
    %c1_i32 = arith.constant 1 : i32
    %9 = arith.cmpi eq, %arg1, %c1_i32 : i32
    %10 = arith.extui %9 : i1 to i32
    %c0_i32_10 = arith.constant 0 : i32
    %11 = arith.cmpi ne, %10, %c0_i32_10 : i32
    scf.if %11 {
      %15 = vector.extract_strided_slice %3 {offsets = [0, 0, 0], sizes = [1, 1, 32], strides = [1, 1, 1]} : vector<1x8x32xbf16> to vector<1x1x32xbf16>
      %16 = arith.extf %15 : vector<1x1x32xbf16> to vector<1x1x32xf32>
      %c0_13 = arith.constant 0 : index
      %c0_14 = arith.constant 0 : index
      %c0_15 = arith.constant 0 : index
      %17 = vector.load %arg9[%c0_13, %c0_14, %c0_15] : memref<1x1x32xf32, #tpu.memory_space<vmem>>, vector<1x1x32xf32>
      %c0_16 = arith.constant 0 : index
      %c0_17 = arith.constant 0 : index
      %18 = memref.load %arg2[%c0_16, %c0_17] : memref<1x1xf32, #tpu.memory_space<smem>>
      %cst_18 = arith.constant 1.600000e+01 : f32
      %19 = arith.mulf %18, %cst_18 : f32
      %20 = vector.broadcast %19 : f32 to vector<1x1x32xf32>
      %21 = arith.mulf %20, %16 : vector<1x1x32xf32>
      %22 = arith.addf %17, %21 : vector<1x1x32xf32>
      %c0_19 = arith.constant 0 : index
      %c0_20 = arith.constant 0 : index
      %c0_21 = arith.constant 0 : index
      %23 = vector.load %arg9[%c0_19, %c0_20, %c0_21] : memref<1x1x32xf32, #tpu.memory_space<vmem>>, vector<1x1x32xf32>
      tpu.vector_store %arg9[%c0_19, %c0_20, %c0_21], %22 {strides = array<i32>} : memref<1x1x32xf32, #tpu.memory_space<vmem>>, vector<1x1x32xf32>,
    } else {
    }
    %c1_i32_11 = arith.constant 1 : i32
    %12 = arith.cmpi eq, %arg1, %c1_i32_11 : i32
    %13 = arith.extui %12 : i1 to i32
    %c0_i32_12 = arith.constant 0 : i32
    %14 = arith.cmpi ne, %13, %c0_i32_12 : i32
    scf.if %14 {
      %c0_13 = arith.constant 0 : index
      %c0_14 = arith.constant 0 : index
      %c0_15 = arith.constant 0 : index
      %15 = vector.load %arg9[%c0_13, %c0_14, %c0_15] : memref<1x1x32xf32, #tpu.memory_space<vmem>>, vector<1x1x32xf32>
      %16 = vector.shape_cast %15 : vector<1x1x32xf32> to vector<1x32xf32>
      %cst_16 = arith.constant 6.250000e-02 : f32
      %17 = vector.broadcast %cst_16 : f32 to vector<1x32xf32>
      %18 = arith.mulf %16, %17 : vector<1x32xf32>
      %c0_17 = arith.constant 0 : index
      %c0_18 = arith.constant 0 : index
      %19 = vector.load %arg4[%c0_17, %c0_18] : memref<32x32xf32, #tpu.memory_space<vmem>>, vector<32x32xf32>
      %cst_19 = arith.constant dense<0.000000e+00> : vector<1x32xf32>
      %20 = tpu.matmul %18, %19, %cst_19 {dimension_numbers = #tpu.dot_dimension_numbers<[1], [1], [0], [0], [0, 0, 1, 0], [], []>} : vector<1x32xf32>, vector<32x32xf32>, vector<1x32xf32> -> vector<1x32xf32>
      %c0_20 = arith.constant 0 : index
      %c0_21 = arith.constant 0 : index
      %21 = vector.load %arg5[%c0_20, %c0_21] : memref<1x32xf32, #tpu.memory_space<vmem>>, vector<1x32xf32>
      %22 = arith.addf %20, %21 : vector<1x32xf32>
      %23 = math.tanh %22 : vector<1x32xf32>
      %c0_22 = arith.constant 0 : index
      %c0_23 = arith.constant 0 : index
      %24 = vector.load %arg6[%c0_22, %c0_23] : memref<128x32xf32, #tpu.memory_space<vmem>>, vector<128x32xf32>
      %cst_24 = arith.constant dense<0.000000e+00> : vector<1x128xf32>
      %25 = tpu.matmul %23, %24, %cst_24 {dimension_numbers = #tpu.dot_dimension_numbers<[1], [1], [0], [0], [0, 0, 1, 0], [], []>} : vector<1x32xf32>, vector<128x32xf32>, vector<1x128xf32> -> vector<1x128xf32>
      %c0_25 = arith.constant 0 : index
      %c0_26 = arith.constant 0 : index
      %26 = vector.load %arg7[%c0_25, %c0_26] : memref<1x128xf32, #tpu.memory_space<vmem>>, vector<1x128xf32>
      %27 = arith.addf %25, %26 : vector<1x128xf32>
      %c0_27 = arith.constant 0 : index
      %c0_28 = arith.constant 0 : index
      %c0_29 = arith.constant 0 : index
      %28 = vector.load %arg8[%c0_27, %c0_28, %c0_29] : memref<1x1x128xf32, #tpu.memory_space<vmem>>, vector<1x1x128xf32>
      %29 = vector.shape_cast %28 : vector<1x1x128xf32> to vector<1x128xf32>
      %30 = vector.shape_cast %27 : vector<1x128xf32> to vector<1x1x128xf32>
      tpu.vector_store %arg8[%c0_27, %c0_28, %c0_29], %30 {strides = array<i32>} : memref<1x1x128xf32, #tpu.memory_space<vmem>>, vector<1x1x128xf32>,
    } else {
    }
    return
  }
  func.func @transform_0(%arg0: i32, %arg1: i32) -> (i32, i32) {
    %c0_i32 = arith.constant 0 : i32
    %c0_i32_0 = arith.constant 0 : i32
    %c0_i32_1 = arith.constant 0 : i32
    return %c0_i32, %c0_i32_0 : i32, i32
  }
  func.func @transform_1(%arg0: i32, %arg1: i32) -> (i32, i32, i32) {
    %c0_i32 = arith.constant 0 : i32
    %c0_i32_0 = arith.constant 0 : i32
    return %arg0, %arg1, %c0_i32 : i32, i32, i32
  }
  func.func @transform_2(%arg0: i32, %arg1: i32) -> (i32, i32) {
    %c0_i32 = arith.constant 0 : i32
    %c0_i32_0 = arith.constant 0 : i32
    %c0_i32_1 = arith.constant 0 : i32
    return %c0_i32, %c0_i32_0 : i32, i32
  }
  func.func @transform_3(%arg0: i32, %arg1: i32) -> (i32, i32) {
    %c0_i32 = arith.constant 0 : i32
    %c0_i32_0 = arith.constant 0 : i32
    %c0_i32_1 = arith.constant 0 : i32
    return %c0_i32, %c0_i32_0 : i32, i32
  }
  func.func @transform_4(%arg0: i32, %arg1: i32) -> (i32, i32) {
    %c0_i32 = arith.constant 0 : i32
    %c0_i32_0 = arith.constant 0 : i32
    %c0_i32_1 = arith.constant 0 : i32
    return %c0_i32, %c0_i32_0 : i32, i32
  }
  func.func @transform_5(%arg0: i32, %arg1: i32) -> (i32, i32) {
    %c0_i32 = arith.constant 0 : i32
    %c0_i32_0 = arith.constant 0 : i32
    %c0_i32_1 = arith.constant 0 : i32
    return %c0_i32, %c0_i32_0 : i32, i32
  }
  func.func @transform_6(%arg0: i32, %arg1: i32) -> (i32, i32, i32) {
    %c0_i32 = arith.constant 0 : i32
    %c0_i32_0 = arith.constant 0 : i32
    %c0_i32_1 = arith.constant 0 : i32
    return %arg0, %c0_i32, %c0_i32_0 : i32, i32, i32
  }
}

</mosaic_0001>

<llo_original>
// kernel: tpu_custom_call.1
$region0: #{tpu_custom_call.1}
  #allocation0 [shape = 'u32[]', space=smem, size = 0x4, offset = 0x4, fixed_abs, tag = 'smem constant byte address 0x4 - core index']
  #allocation1 [shape = 'u32[144,128]{1,0:T(1,128)}', space=vmem, size = 0x12000, scoped, tag = 'internal scratch']
  #allocation2 [shape = 'f32[1,1,32]{2,1,0:T(1,128)}', space=vmem, size = 0x200, scoped, tag = 'scratch operand']
  #allocation3 [shape = 'f32[1,1]{1,0:T(1,128)S(6)}', space=smem, size = 0x200, scoped, tag = 'scoped memory for tpu_custom_call.1']
  %s0 = inlined_call_operand.<no memory space> [shape: f32[1,1], index: 0, kind: input, shape index: {}]
  %s1 = inlined_call_operand.vmem [shape: bf16[2,16,32], index: 1, kind: input, shape index: {}]
  %s2 = inlined_call_operand.vmem [shape: f32[32,32], index: 2, kind: input, shape index: {}]
  %s3 = inlined_call_operand.vmem [shape: f32[1,32], index: 3, kind: input, shape index: {}]
  %s4 = inlined_call_operand.vmem [shape: f32[128,32], index: 4, kind: input, shape index: {}]
  %s5 = inlined_call_operand.vmem [shape: f32[1,128], index: 5, kind: input, shape index: {}]
  %s6 = inlined_call_operand.hbm [shape: f32[2,1,128], index: 6, kind: output, shape index: {}]
  %s7 = sld [smem:[#allocation0]]
  $region65: #{tpu_custom_call.1} parent=0
    _
  %s9 = ssub.s32 1, %s7
  %s10 = scalar_select 0, %s9, %s7
  %11 = sst [smem:[#allocation3]] %s0
  $region1: #{tpu_custom_call.1} parent=0
    #allocation4 [shape = 'u8[1024]{0}', space=vmem, size = 0x400, scoped, tag = 'output window, operand 0']
    #allocation5 [shape = 's32[2]{0}', space=sflag, size = 0x8, scoped, tag = 'scoped memory for tpu_custom_call.1']
    %12 = vsyncpa [#allocation5], 0
    %s13 = scalar_lea.sflag [#allocation5], 1
    %14 = vsyncpa %s13, 0
    loop: start=0, step=1, limit=6
    $region2: #{tpu_custom_call.1} parent=1 // loop_pre_header
      _
    $region3: #{tpu_custom_call.1} parent=1 // loop_header
      %s16 = sphi 0, %s20
      %p17 = scmp.ge.s32.totalorder %s16, 6
      %s23 = sphi 0, %s35
      %s24 = sphi 0, %s31
      %s25 = sphi 0, %s23
      %s26 = sphi 0, %s24
      %s27 = sphi 0, %s25
      %s28 = sphi 0, %s26
      %s36 = sphi 0, %s36
      %s38 = sphi 0, %s36
      %s39 = sphi 0, %s38
      %s53 = sphi 0, %s39
      %s61 = sphi 0, %s63
      %s64 = sphi 0, %s61
      %s65 = sphi 0, %s64
      %s81 = sphi 0, %s65
      %s85 = sphi 0, %s85
      %s87 = sphi 0, %s85
      %s88 = sphi 0, %s87
      %s102 = sphi 0, %s88
      %s106 = sphi 0, %s106
      %s108 = sphi 0, %s106
      %s109 = sphi 0, %s108
      %s123 = sphi 0, %s109
      %s127 = sphi 0, %s127
      %s129 = sphi 0, %s127
      %s130 = sphi 0, %s129
      %s144 = sphi 0, %s130
      %s148 = sphi 0, %s148
      %s150 = sphi 0, %s148
      %s151 = sphi 0, %s150
      %s165 = sphi 0, %s151
      %s171 = sphi 0, %s173
      %s174 = sphi 0, %s171
      %s175 = sphi 0, %s174
      %s191 = sphi 0, %s175
    $region4: #{tpu_custom_call.1} parent=1 // loop_header_branch
      %19 = sbr.rel (%p17) target = $region8
    $region5: #{tpu_custom_call.1} parent=1 // loop_body
      %s21 = ssub.s32 %s16, 1
      %s22 = ssub.s32 %s16, 2
      %s29 = sadd.s32 1, %s24
      %p30 = scmp.ge.s32.totalorder %s29, 2
      %s31 = scalar_select %p30, 0, %s29
      %s32 = sadd.s32 1, %s23
      %s33 = scalar_select %p30, %s32, %s23
      %p34 = scmp.ge.s32.totalorder %s33, 2
      %s35 = scalar_select %p34, 0, %s33
      %s37 = sadd.s32 %s36, 1
      %p40 = scmp.eq.s32.totalorder %s16, 3
      %p41 = scmp.ne.s32.totalorder %s36, %s38
      %p42 = scmp.eq.s32.totalorder %s16, 0
      %p43 = por %p41, %p42
      %p44 = scmp.ne.s32.totalorder %s36, %s38
      %p45 = scmp.eq.s32.totalorder %s21, 3
      %p46 = por %p44, %p45
      %p47 = scmp.ne.s32.totalorder %s38, %s39
      %p48 = scmp.eq.s32.totalorder %s21, 0
      %p49 = por %p47, %p48
      %p50 = scmp.ne.s32.totalorder %s38, %s39
      %p51 = scmp.eq.s32.totalorder %s22, 3
      %p52 = por %p50, %p51
      %p54 = scmp.ne.s32.totalorder %s39, %s53
      %p55 = scmp.eq.s32.totalorder %s22, 0
      %p56 = por %p54, %p55
      %s57 = ssub.s32 %s23, %s35
      %s58 = ssub.s32 %s24, %s31
      %s59 = sor.u32 %s57, %s58
      %p60 = scmp.eq.s32.totalorder %s59, 0
      %s62 = sadd.s32 %s61, 1
      %s63 = scalar_select %p60, %s61, %s62
      %p66 = pneg %p60
      %p67 = scmp.eq.s32.totalorder %s16, 3
      %p68 = por %p66, %p67
      %p69 = scmp.ne.s32.totalorder %s61, %s64
      %p70 = scmp.eq.s32.totalorder %s16, 0
      %p71 = por %p69, %p70
      %p72 = scmp.ne.s32.totalorder %s61, %s64
      %p73 = scmp.eq.s32.totalorder %s21, 3
      %p74 = por %p72, %p73
      %p75 = scmp.ne.s32.totalorder %s64, %s65
      %p76 = scmp.eq.s32.totalorder %s21, 0
      %p77 = por %p75, %p76
      %p78 = scmp.ne.s32.totalorder %s64, %s65
      %p79 = scmp.eq.s32.totalorder %s22, 3
      %p80 = por %p78, %p79
      %p82 = scmp.ne.s32.totalorder %s65, %s81
      %p83 = scmp.eq.s32.totalorder %s22, 0
      %p84 = por %p82, %p83
      %s86 = sadd.s32 %s85, 1
      %p89 = scmp.eq.s32.totalorder %s16, 3
      %p90 = scmp.ne.s32.totalorder %s85, %s87
      %p91 = scmp.eq.s32.totalorder %s16, 0
      %p92 = por %p90, %p91
      %p93 = scmp.ne.s32.totalorder %s85, %s87
      %p94 = scmp.eq.s32.totalorder %s21, 3
      %p95 = por %p93, %p94
      %p96 = scmp.ne.s32.totalorder %s87, %s88
      %p97 = scmp.eq.s32.totalorder %s21, 0
      %p98 = por %p96, %p97
      %p99 = scmp.ne.s32.totalorder %s87, %s88
      %p100 = scmp.eq.s32.totalorder %s22, 3
      %p101 = por %p99, %p100
      %p103 = scmp.ne.s32.totalorder %s88, %s102
      %p104 = scmp.eq.s32.totalorder %s22, 0
      %p105 = por %p103, %p104
      %s107 = sadd.s32 %s106, 1
      %p110 = scmp.eq.s32.totalorder %s16, 3
      %p111 = scmp.ne.s32.totalorder %s106, %s108
      %p112 = scmp.eq.s32.totalorder %s16, 0
      %p113 = por %p111, %p112
      %p114 = scmp.ne.s32.totalorder %s106, %s108
      %p115 = scmp.eq.s32.totalorder %s21, 3
      %p116 = por %p114, %p115
      %p117 = scmp.ne.s32.totalorder %s108, %s109
      %p118 = scmp.eq.s32.totalorder %s21, 0
      %p119 = por %p117, %p118
      %p120 = scmp.ne.s32.totalorder %s108, %s109
      %p121 = scmp.eq.s32.totalorder %s22, 3
      %p122 = por %p120, %p121
      %p124 = scmp.ne.s32.totalorder %s109, %s123
      %p125 = scmp.eq.s32.totalorder %s22, 0
      %p126 = por %p124, %p125
      %s128 = sadd.s32 %s127, 1
      %p131 = scmp.eq.s32.totalorder %s16, 3
      %p132 = scmp.ne.s32.totalorder %s127, %s129
      %p133 = scmp.eq.s32.totalorder %s16, 0
      %p134 = por %p132, %p133
      %p135 = scmp.ne.s32.totalorder %s127, %s129
      %p136 = scmp.eq.s32.totalorder %s21, 3
      %p137 = por %p135, %p136
      %p138 = scmp.ne.s32.totalorder %s129, %s130
      %p139 = scmp.eq.s32.totalorder %s21, 0
      %p140 = por %p138, %p139
      %p141 = scmp.ne.s32.totalorder %s129, %s130
      %p142 = scmp.eq.s32.totalorder %s22, 3
      %p143 = por %p141, %p142
      %p145 = scmp.ne.s32.totalorder %s130, %s144
      %p146 = scmp.eq.s32.totalorder %s22, 0
      %p147 = por %p145, %p146
      %s149 = sadd.s32 %s148, 1
      %p152 = scmp.eq.s32.totalorder %s16, 3
      %p153 = scmp.ne.s32.totalorder %s148, %s150
      %p154 = scmp.eq.s32.totalorder %s16, 0
      %p155 = por %p153, %p154
      %p156 = scmp.ne.s32.totalorder %s148, %s150
      %p157 = scmp.eq.s32.totalorder %s21, 3
      %p158 = por %p156, %p157
      %p159 = scmp.ne.s32.totalorder %s150, %s151
      %p160 = scmp.eq.s32.totalorder %s21, 0
      %p161 = por %p159, %p160
      %p162 = scmp.ne.s32.totalorder %s150, %s151
      %p163 = scmp.eq.s32.totalorder %s22, 3
      %p164 = por %p162, %p163
      %p166 = scmp.ne.s32.totalorder %s151, %s165
      %p167 = scmp.eq.s32.totalorder %s22, 0
      %p168 = por %p166, %p167
      %s169 = ssub.s32 %s23, %s35
      %p170 = scmp.eq.s32.totalorder %s169, 0
      %s172 = sadd.s32 %s171, 1
      %s173 = scalar_select %p170, %s171, %s172
      %p176 = pneg %p170
      %p177 = scmp.eq.s32.totalorder %s16, 3
      %p178 = por %p176, %p177
      %p179 = scmp.ne.s32.totalorder %s171, %s174
      %p180 = scmp.eq.s32.totalorder %s16, 0
      %p181 = por %p179, %p180
      %p182 = scmp.ne.s32.totalorder %s171, %s174
      %p183 = scmp.eq.s32.totalorder %s21, 3
      %p184 = por %p182, %p183
      %p185 = scmp.ne.s32.totalorder %s174, %s175
      %p186 = scmp.eq.s32.totalorder %s21, 0
      %p187 = por %p185, %p186
      %p188 = scmp.ne.s32.totalorder %s174, %s175
      %p189 = scmp.eq.s32.totalorder %s22, 3
      %p190 = por %p188, %p189
      %p192 = scmp.ne.s32.totalorder %s175, %s191
      %p193 = scmp.eq.s32.totalorder %s22, 0
      %p194 = por %p192, %p193
      %p195 = scmp.le.s32.totalorder 1, %s16
      %p196 = scmp.lt.s32.totalorder %s16, 5
      %p197 = pnand %p195, %p196
      %p198 = pneg %p197
      // Predicated region
      $region9: #{tpu_custom_call.1} parent=5 // pred_check
        _
      $region10: #{tpu_custom_call.1} parent=5 // pred_check_branch
        %200 = sbr.rel (%p197) target = $region12
      $region11: #{tpu_custom_call.1} parent=5 // pred_region
        %s201 = ssub.s32 %s16, 1
        // Predicated region
        $region13: #{tpu_custom_call.1} parent=11 // pred_check
          %p202 = pneg %p49
        $region14: #{tpu_custom_call.1} parent=11 // pred_check_branch
          %204 = sbr.rel (%p202) target = $region16
        $region15: #{tpu_custom_call.1} parent=11 // pred_region
          _
        $region16: #{tpu_custom_call.1} parent=11 // pred_fallthru
          _
        // Predicated region
        $region17: #{tpu_custom_call.1} parent=11 // pred_check
          %p205 = pneg %p98
        $region18: #{tpu_custom_call.1} parent=11 // pred_check_branch
          %207 = sbr.rel (%p205) target = $region20
        $region19: #{tpu_custom_call.1} parent=11 // pred_region
          _
        $region20: #{tpu_custom_call.1} parent=11 // pred_fallthru
          _
        // Predicated region
        $region21: #{tpu_custom_call.1} parent=11 // pred_check
          %p208 = pneg %p119
        $region22: #{tpu_custom_call.1} parent=11 // pred_check_branch
          %210 = sbr.rel (%p208) target = $region24
        $region23: #{tpu_custom_call.1} parent=11 // pred_region
          _
        $region24: #{tpu_custom_call.1} parent=11 // pred_fallthru
          _
        // Predicated region
        $region25: #{tpu_custom_call.1} parent=11 // pred_check
          %p211 = pneg %p140
        $region26: #{tpu_custom_call.1} parent=11 // pred_check_branch
          %213 = sbr.rel (%p211) target = $region28
        $region27: #{tpu_custom_call.1} parent=11 // pred_region
          _
        $region28: #{tpu_custom_call.1} parent=11 // pred_fallthru
          _
        // Predicated region
        $region29: #{tpu_custom_call.1} parent=11 // pred_check
          %p214 = pneg %p161
        $region30: #{tpu_custom_call.1} parent=11 // pred_check_branch
          %216 = sbr.rel (%p214) target = $region32
        $region31: #{tpu_custom_call.1} parent=11 // pred_region
          _
        $region32: #{tpu_custom_call.1} parent=11 // pred_fallthru
          _
      $region12: #{tpu_custom_call.1} parent=5 // pred_fallthru
        _
      %p217 = scmp.lt.s32.totalorder %s16, 4
      // Predicated region
      $region33: #{tpu_custom_call.1} parent=5 // pred_check
        %p218 = pneg %p217
      $region34: #{tpu_custom_call.1} parent=5 // pred_check_branch
        %220 = sbr.rel (%p218) target = $region36
      $region35: #{tpu_custom_call.1} parent=5 // pred_region
        // Predicated region
        $region37: #{tpu_custom_call.1} parent=35 // pred_check
          %p221 = pneg %p71
        $region38: #{tpu_custom_call.1} parent=35 // pred_check_branch
          %223 = sbr.rel (%p221) target = $region40
        $region39: #{tpu_custom_call.1} parent=35 // pred_region
          %p224 = scmp.lt.s32.totalorder %s23, 1
          %s225 = scalar_select %p224, %s23, 1
          %p226 = scmp.lt.s32.totalorder %s24, 1
          %s227 = scalar_select %p226, %s24, 1
          %s228 = smul.addr %s225, 2
          %s229 = sadd.s32 %s227, %s228
          %s230 = smul.addr %s229, 4
          %s231 = scalar_lea.vmem %s1, %s230
        $region40: #{tpu_custom_call.1} parent=35 // pred_fallthru
          _
      $region36: #{tpu_custom_call.1} parent=5 // pred_fallthru
        _
      %p232 = scmp.le.s32.totalorder 1, %s16
      %p233 = scmp.lt.s32.totalorder %s16, 5
      %p234 = pnand %p232, %p233
      %p235 = pneg %p234
      // Predicated region
      $region41: #{tpu_custom_call.1} parent=5 // pred_check
        _
      $region42: #{tpu_custom_call.1} parent=5 // pred_check_branch
        %237 = sbr.rel (%p234) target = $region44
      $region43: #{tpu_custom_call.1} parent=5 // pred_region
        %s238 = ssub.s32 %s16, 1
        %p239 = pneg %p49
        %p240 = pneg %p46
        %p241 = scmp.lt.s32.totalorder %s25, 1
        %s242 = scalar_select %p241, %s25, 1
        %p243 = scmp.lt.s32.totalorder %s26, 1
        %s244 = scalar_select %p243, %s26, 1
        %s245 = smul.addr %s242, 2
        %s246 = sadd.s32 %s244, %s245
        %s247 = smul.addr %s246, 4
        %s248 = scalar_lea.vmem %s1, %s247
        %p249 = pneg %p77
        %p250 = pneg %p74
        %p251 = pneg %p98
        %p252 = pneg %p95
        %p253 = pneg %p119
        %p254 = pneg %p116
        %p255 = pneg %p140
        %p256 = pneg %p137
        %p257 = pneg %p161
        %p258 = pneg %p158
        %p259 = pneg %p187
        %p260 = pneg %p184
        %s261 = sand.u32 %s174, 1
        %s262 = scalar_lea.sflag [#allocation5], %s261
        %s263 = sand.u32 %s174, 1
        %s264 = scalar_lea.vmem [#allocation4], %s263
        %p265 = scmp.lt.s32.totalorder %s25, 1
        %s266 = scalar_select %p265, %s25, 1
        %p267 = scmp.lt.s32.totalorder %s26, 1
        %s268 = scalar_select %p267, %s26, 1
        %s269 = smul.addr %s266, 2
        %s270 = sadd.s32 %s268, %s269
        %s271 = smul.addr %s270, 4
        %s272 = scalar_lea.vmem %s1, %s271
        %p275 = scmp.eq.s32.totalorder %s26, 0
        // Predicated region
        $region45: #{tpu_custom_call.1} parent=43 // pred_check
          %p276 = pneg %p275
        $region46: #{tpu_custom_call.1} parent=43 // pred_check_branch
          %278 = sbr.rel (%p276) target = $region48
        $region47: #{tpu_custom_call.1} parent=43 // pred_region
          %vm279 = vcmask 253952
          %280 = vst.msk [vmem:[#allocation2] sm:$0x1] %vm279, 0.0
        $region48: #{tpu_custom_call.1} parent=43 // pred_fallthru
          _
        %v281 = vld [vmem:[%s272] sm:$0xf]
        %v282 = vld [vmem:[#allocation2] sm:$0x1]
        %vm283 = vcmask 64512
        %v285 = vsel %vm283, 1065369472, 0
        %vm287 = vcmask 1043456
        %v289 = vsel %vm287, %v281, 0
        %291 = vmatprep.subr.bf16.mxu0 0
        %292 = vmatpush1.bf16.msra.mxu0 0
        %293 = vmatprep.subr.bf16.mxu0 0
        %294 = vmatpush1.bf16.msra.mxu0 0
        %295 = vmatprep.subr.bf16.mxu0 0
        %296 = vmatpush1.bf16.msra.mxu0 0
        %297 = vmatprep.subr.bf16.mxu0 0
        %298 = vmatpush1.bf16.msra.mxu0 0
        %299 = vmatprep.subr.bf16.mxu0 0
        %300 = vmatpush1.bf16.msra.mxu0 0
        %301 = vmatprep.subr.bf16.mxu0 0
        %302 = vmatpush1.bf16.msra.mxu0 0
        %303 = vmatprep.subr.bf16.mxu0 0
        %304 = vmatpush1.bf16.msra.mxu0 0
        %305 = vmatprep.subr.bf16.mxu0 0
        %306 = vmatpush1.bf16.msra.mxu0 %v289
        %307 = vmatprep.subr.bf16.mxu0 0
        %308 = vmatpush2.bf16.msra.mxu0 0
        %309 = vmatprep.subr.bf16.mxu0 0
        %310 = vmatpush2.bf16.msra.mxu0 0
        %311 = vmatprep.subr.bf16.mxu0 0
        %312 = vmatpush2.bf16.msra.mxu0 0
        %313 = vmatprep.subr.bf16.mxu0 0
        %314 = vmatpush2.bf16.msra.mxu0 0
        %315 = vmatprep.subr.bf16.mxu0 0
        %316 = vmatpush2.bf16.msra.mxu0 0
        %317 = vmatprep.subr.bf16.mxu0 0
        %318 = vmatpush2.bf16.msra.mxu0 0
        %319 = vmatprep.subr.bf16.mxu0 0
        %320 = vmatpush2.bf16.msra.mxu0 0
        %321 = vmatprep.subr.bf16.mxu0 0
        %322 = vmatpush2.bf16.msra.mxu0 0
        %323 = vmatprep.mubr.bf16.mxu0 0
        %324 = vmatmul.mubr.bf16.gmra.mxu0 %v285
        %v325 = vpop.f32.mrf.mxu0
        %v326 = vadd.f32 0.0, %v325
        %v327 = vpop.f32.mrf.mxu0
        %v328 = vpop.f32.mrf.mxu0
        %v329 = vpop.f32.mrf.mxu0
        %330 = vdwg.mxu0
        %v331 = vadd.f32 %v282, %v326
        %vm332 = vcmask 253952
        %333 = vst.msk [vmem:[#allocation2] sm:$0x1] %vm332, %v331
        %p334 = scmp.eq.s32.totalorder %s26, 1
        // Predicated region
        $region49: #{tpu_custom_call.1} parent=43 // pred_check
          %p335 = pneg %p334
        $region50: #{tpu_custom_call.1} parent=43 // pred_check_branch
          %337 = sbr.rel (%p335) target = $region52
        $region51: #{tpu_custom_call.1} parent=43 // pred_region
          %v338 = vunpack.c.l.bf16 %v281
          %v339 = vld [vmem:[#allocation2] sm:$0x1]
          %s340 = sld [smem:[#allocation3]]
          %s341 = smul.f32 %s340, 16.0
          %v342 = vstv %s341
          %v343 = vmul.f32 %v342, %v338
          %v344 = vadd.f32 %v339, %v343
          %345 = vst.msk [vmem:[#allocation2] sm:$0x1] %vm332, %v344
          %v346 = vld [vmem:[#allocation2] sm:$0x1]
          %v347 = vmul.f32 %v346, 0.0625
          %v348 = vld [vmem:[%s2] sm:$0xff]
          %v349 = vld [vmem:[%s2 + $0x8] sm:$0xff]
          %v350 = vld [vmem:[%s2 + $0x10] sm:$0xff]
          %v351 = vld [vmem:[%s2 + $0x18] sm:$0xff]
          %v352 = vld [vmem:[%s3] sm:$0x1]
          %vm353 = vcmask 261120
          %v355 = vsel %vm353, %v347, 0
          %v358 = vsel %vm353, %v348, 0
          %v361 = vsel %vm353, %v349, 0
          %v364 = vsel %vm353, %v350, 0
          %v367 = vsel %vm353, %v351, 0
          %369 = vmatprep.subr.mxu0 0.0
          %370 = vmatpush1.xpose.msra.mxu0 0.0
          %371 = vmatprep.subr.mxu0 0.0
          %372 = vmatpush1.xpose.msra.mxu0 0.0
          %373 = vmatprep.subr.mxu0 0.0
          %374 = vmatpush1.xpose.msra.mxu0 0.0
          %375 = vmatprep.subr.mxu0 0.0
          %376 = vmatpush1.xpose.msra.mxu0 0.0
          %377 = vmatprep.subr.mxu0 0.0
          %378 = vmatpush1.xpose.msra.mxu0 0.0
          %379 = vmatprep.subr.mxu0 0.0
          %380 = vmatpush1.xpose.msra.mxu0 0.0
          %381 = vmatprep.subr.mxu0 0.0
          %382 = vmatpush1.xpose.msra.mxu0 0.0
          %383 = vmatprep.subr.mxu0 0.0
          %384 = vmatpush1.xpose.msra.mxu0 0.0
          %385 = vmatprep.subr.mxu0 0.0
          %386 = vmatpush1.xpose.msra.mxu0 0.0
          %387 = vmatprep.subr.mxu0 0.0
          %388 = vmatpush1.xpose.msra.mxu0 0.0
          %389 = vmatprep.subr.mxu0 0.0
          %390 = vmatpush1.xpose.msra.mxu0 0.0
          %391 = vmatprep.subr.mxu0 0.0
          %392 = vmatpush1.xpose.msra.mxu0 0.0
          %393 = vmatprep.subr.mxu0 0.0
          %394 = vmatpush1.xpose.msra.mxu0 %v367
          %395 = vmatprep.subr.mxu0 0.0
          %396 = vmatpush1.xpose.msra.mxu0 %v364
          %397 = vmatprep.subr.mxu0 0.0
          %398 = vmatpush1.xpose.msra.mxu0 %v361
          %399 = vmatprep.subr.mxu0 0.0
          %400 = vmatpush1.xpose.msra.mxu0 %v358
          %401 = vmatprep.subr.mxu0 0.0
          %402 = vmatpush2.xpose.msra.mxu0 0.0
          %403 = vmatprep.subr.mxu0 0.0
          %404 = vmatpush2.xpose.msra.mxu0 0.0
          %405 = vmatprep.subr.mxu0 0.0
          %406 = vmatpush2.xpose.msra.mxu0 0.0
          %407 = vmatprep.subr.mxu0 0.0
          %408 = vmatpush2.xpose.msra.mxu0 0.0
          %409 = vmatprep.subr.mxu0 0.0
          %410 = vmatpush2.xpose.msra.mxu0 0.0
          %411 = vmatprep.subr.mxu0 0.0
          %412 = vmatpush2.xpose.msra.mxu0 0.0
          %413 = vmatprep.subr.mxu0 0.0
          %414 = vmatpush2.xpose.msra.mxu0 0.0
          %415 = vmatprep.subr.mxu0 0.0
          %416 = vmatpush2.xpose.msra.mxu0 0.0
          %417 = vmatprep.subr.mxu0 0.0
          %418 = vmatpush2.xpose.msra.mxu0 0.0
          %419 = vmatprep.subr.mxu0 0.0
          %420 = vmatpush2.xpose.msra.mxu0 0.0
          %421 = vmatprep.subr.mxu0 0.0
          %422 = vmatpush2.xpose.msra.mxu0 0.0
          %423 = vmatprep.subr.mxu0 0.0
          %424 = vmatpush2.xpose.msra.mxu0 0.0
          %425 = vmatprep.subr.mxu0 0.0
          %426 = vmatpush2.xpose.msra.mxu0 0.0
          %427 = vmatprep.subr.mxu0 0.0
          %428 = vmatpush2.xpose.msra.mxu0 0.0
          %429 = vmatprep.subr.mxu0 0.0
          %430 = vmatpush2.xpose.msra.mxu0 0.0
          %431 = vmatprep.subr.mxu0 0.0
          %432 = vmatpush2.xpose.msra.mxu0 0.0
          %433 = vmatprep.mubr.f32.mxu0 0.0
          %434 = vmatmul.mubr.f32.gmra.mxu0 %v355
          %v435 = vpop.f32.mrf.mxu0
          %v436 = vadd.f32 %v352, %v435
          %v437 = vpop.f32.mrf.mxu0
          %438 = vdwg.mxu0
          %v439 = vtanh.pop %v436
          %v440 = vld [vmem:[%s4] sm:$0xff]
          %v441 = vld [vmem:[%s4 + $0x8] sm:$0xff]
          %v442 = vld [vmem:[%s4 + $0x10] sm:$0xff]
          %v443 = vld [vmem:[%s4 + $0x18] sm:$0xff]
          %v444 = vld [vmem:[%s4 + $0x20] sm:$0xff]
          %v445 = vld [vmem:[%s4 + $0x28] sm:$0xff]
          %v446 = vld [vmem:[%s4 + $0x30] sm:$0xff]
          %v447 = vld [vmem:[%s4 + $0x38] sm:$0xff]
          %v448 = vld [vmem:[%s4 + $0x40] sm:$0xff]
          %v449 = vld [vmem:[%s4 + $0x48] sm:$0xff]
          %v450 = vld [vmem:[%s4 + $0x50] sm:$0xff]
          %v451 = vld [vmem:[%s4 + $0x58] sm:$0xff]
          %v452 = vld [vmem:[%s4 + $0x60] sm:$0xff]
          %v453 = vld [vmem:[%s4 + $0x68] sm:$0xff]
          %v454 = vld [vmem:[%s4 + $0x70] sm:$0xff]
          %v455 = vld [vmem:[%s4 + $0x78] sm:$0xff]
          %v456 = vld [vmem:[%s5] sm:$0x1]
          %v458 = vsel %vm353, %v439, 0
          %v461 = vsel %vm353, %v440, 0
          %v464 = vsel %vm353, %v441, 0
          %v467 = vsel %vm353, %v442, 0
          %v470 = vsel %vm353, %v443, 0
          %v473 = vsel %vm353, %v444, 0
          %v476 = vsel %vm353, %v445, 0
          %v479 = vsel %vm353, %v446, 0
          %v482 = vsel %vm353, %v447, 0
          %v485 = vsel %vm353, %v448, 0
          %v488 = vsel %vm353, %v449, 0
          %v491 = vsel %vm353, %v450, 0
          %v494 = vsel %vm353, %v451, 0
          %v497 = vsel %vm353, %v452, 0
          %v500 = vsel %vm353, %v453, 0
          %v503 = vsel %vm353, %v454, 0
          %v506 = vsel %vm353, %v455, 0
          %508 = vmatprep.subr.mxu0 0.0
          %509 = vmatpush1.xpose.msra.mxu0 %v506
          %510 = vmatprep.subr.mxu0 0.0
          %511 = vmatpush1.xpose.msra.mxu0 %v503
          %512 = vmatprep.subr.mxu0 0.0
          %513 = vmatpush1.xpose.msra.mxu0 %v500
          %514 = vmatprep.subr.mxu0 0.0
          %515 = vmatpush1.xpose.msra.mxu0 %v497
          %516 = vmatprep.subr.mxu0 0.0
          %517 = vmatpush1.xpose.msra.mxu0 %v494
          %518 = vmatprep.subr.mxu0 0.0
          %519 = vmatpush1.xpose.msra.mxu0 %v491
          %520 = vmatprep.subr.mxu0 0.0
          %521 = vmatpush1.xpose.msra.mxu0 %v488
          %522 = vmatprep.subr.mxu0 0.0
          %523 = vmatpush1.xpose.msra.mxu0 %v485
          %524 = vmatprep.subr.mxu0 0.0
          %525 = vmatpush1.xpose.msra.mxu0 %v482
          %526 = vmatprep.subr.mxu0 0.0
          %527 = vmatpush1.xpose.msra.mxu0 %v479
          %528 = vmatprep.subr.mxu0 0.0
          %529 = vmatpush1.xpose.msra.mxu0 %v476
          %530 = vmatprep.subr.mxu0 0.0
          %531 = vmatpush1.xpose.msra.mxu0 %v473
          %532 = vmatprep.subr.mxu0 0.0
          %533 = vmatpush1.xpose.msra.mxu0 %v470
          %534 = vmatprep.subr.mxu0 0.0
          %535 = vmatpush1.xpose.msra.mxu0 %v467
          %536 = vmatprep.subr.mxu0 0.0
          %537 = vmatpush1.xpose.msra.mxu0 %v464
          %538 = vmatprep.subr.mxu0 0.0
          %539 = vmatpush1.xpose.msra.mxu0 %v461
          %540 = vmatprep.subr.mxu0 0.0
          %541 = vmatpush2.xpose.msra.mxu0 0.0
          %542 = vmatprep.subr.mxu0 0.0
          %543 = vmatpush2.xpose.msra.mxu0 0.0
          %544 = vmatprep.subr.mxu0 0.0
          %545 = vmatpush2.xpose.msra.mxu0 0.0
          %546 = vmatprep.subr.mxu0 0.0
          %547 = vmatpush2.xpose.msra.mxu0 0.0
          %548 = vmatprep.subr.mxu0 0.0
          %549 = vmatpush2.xpose.msra.mxu0 0.0
          %550 = vmatprep.subr.mxu0 0.0
          %551 = vmatpush2.xpose.msra.mxu0 0.0
          %552 = vmatprep.subr.mxu0 0.0
          %553 = vmatpush2.xpose.msra.mxu0 0.0
          %554 = vmatprep.subr.mxu0 0.0
          %555 = vmatpush2.xpose.msra.mxu0 0.0
          %556 = vmatprep.subr.mxu0 0.0
          %557 = vmatpush2.xpose.msra.mxu0 0.0
          %558 = vmatprep.subr.mxu0 0.0
          %559 = vmatpush2.xpose.msra.mxu0 0.0
          %560 = vmatprep.subr.mxu0 0.0
          %561 = vmatpush2.xpose.msra.mxu0 0.0
          %562 = vmatprep.subr.mxu0 0.0
          %563 = vmatpush2.xpose.msra.mxu0 0.0
          %564 = vmatprep.subr.mxu0 0.0
          %565 = vmatpush2.xpose.msra.mxu0 0.0
          %566 = vmatprep.subr.mxu0 0.0
          %567 = vmatpush2.xpose.msra.mxu0 0.0
          %568 = vmatprep.subr.mxu0 0.0
          %569 = vmatpush2.xpose.msra.mxu0 0.0
          %570 = vmatprep.subr.mxu0 0.0
          %571 = vmatpush2.xpose.msra.mxu0 0.0
          %572 = vmatprep.mubr.f32.mxu0 0.0
          %573 = vmatmul.mubr.f32.gmra.mxu0 %v458
          %v574 = vpop.f32.mrf.mxu0
          %v575 = vadd.f32 %v456, %v574
          %v576 = vpop.f32.mrf.mxu0
          %577 = vdwg.mxu0
          %578 = vst [vmem:[%s264] sm:$0x1] %v575
        $region52: #{tpu_custom_call.1} parent=43 // pred_fallthru
          _
        %s579 = sand.u32 %s174, 1
        %s580 = scalar_lea.sflag [#allocation5], %s579
        %s581 = sand.u32 %s174, 1
        %s582 = scalar_lea.vmem [#allocation4], %s581
        // Predicated region
        $region53: #{tpu_custom_call.1} parent=43 // pred_check
          %p583 = pneg %p184
        $region54: #{tpu_custom_call.1} parent=43 // pred_check_branch
          %585 = sbr.rel (%p583) target = $region56
        $region55: #{tpu_custom_call.1} parent=43 // pred_region
          %s587 = ssub.s32 16, 16
          %588 = vsyncadd %s580, %s587
          %s589 = smul.addr %s25, 16
          %s590 = scalar_lea.hbm %s6, %s589
          %s592 = sshll.u32 %s582, 4
          %s593 = int_to_ptr.vmem [resolvable:$true] %s592
          %595 = dma.vmem_to_hbm [thread:$0]  %s593, 16, %s590, %s580
        $region56: #{tpu_custom_call.1} parent=43 // pred_fallthru
          _
      $region44: #{tpu_custom_call.1} parent=5 // pred_fallthru
        _
      %p596 = scmp.le.s32.totalorder 2, %s16
      // Predicated region
      $region57: #{tpu_custom_call.1} parent=5 // pred_check
        %p597 = pneg %p596
      $region58: #{tpu_custom_call.1} parent=5 // pred_check_branch
        %599 = sbr.rel (%p597) target = $region60
      $region59: #{tpu_custom_call.1} parent=5 // pred_region
        %s600 = ssub.s32 %s16, 2
        // Predicated region
        $region61: #{tpu_custom_call.1} parent=59 // pred_check
          %p601 = pneg %p190
        $region62: #{tpu_custom_call.1} parent=59 // pred_check_branch
          %603 = sbr.rel (%p601) target = $region64
        $region63: #{tpu_custom_call.1} parent=59 // pred_region
          %s604 = sand.u32 %s175, 1
          %s605 = scalar_lea.sflag [#allocation5], %s604
          %s606 = sand.u32 %s175, 1
          %s607 = scalar_lea.vmem [#allocation4], %s606
          %608 = dma.done %s605, 16
        $region64: #{tpu_custom_call.1} parent=59 // pred_fallthru
          _
      $region60: #{tpu_custom_call.1} parent=5 // pred_fallthru
        _
    $region6: #{tpu_custom_call.1} parent=1 // loop_footer
      %s20 = sadd.s32 1, %s16
    $region7: #{tpu_custom_call.1} parent=1 // loop_footer_branch
      %15 = sbr.rel target = $region3
    $region8: #{tpu_custom_call.1} parent=1 // loop_exit
      _
    %609 = vsyncpa [#allocation5], 1
    %s610 = scalar_lea.sflag [#allocation5], 1
    %611 = vsyncpa %s610, 1

</llo_original>
